<compile_context>
chip_gen: v7x
topology: tpu7x:2x2x1
jax: 0.10.0
libtpu: 0.0.40
codegen_flags: <defaults>
</compile_context>

<pallas_src>
import functools

import jax
import jax.numpy as jnp
from jax.experimental import pallas as pl
from jax.experimental.pallas import tpu as pltpu

BN_EPS = 1e-5
OUT_PAD = 128  # lane-dense padded output width (>= output_dim)


def _bn_relu(h, gamma, beta):
    """Training-mode BatchNorm1d (biased batch variance) + ReLU, fused.

    Uses the centered (two-pass) variance: numerically robust, same op count
    as the scale/shift form once fused.
    """
    # TODO(synk): once batch tiles reach 256+, compute the batch statistics
    # with an MXU matmul (ones(1,B) @ [h, h*h]) instead of XLU cross-sublane
    # reduces sitting on the serial critical path between matmuls.
    mean = jnp.mean(h, axis=0, keepdims=True)
    hc = h - mean
    var = jnp.mean(hc * hc, axis=0, keepdims=True)
    scale = gamma * jax.lax.rsqrt(var + BN_EPS)
    return jnp.maximum(hc * scale + beta, 0.0)


def bnmlp_kernel(x_ref, w1_ref, w2_ref, w3_ref, w4_ref, wp_ref, p_ref, o_ref):
    # p_ref layout ([9, 256] f32):
    #   0:g1 1:be1 2:g2 3:be2 4:g3 5:be3 6:g4 7:be4 8:bp (each right-padded w/ 0)
    x = x_ref[...].astype(jnp.float32)

    # Feature expansion cat([x, x^2, sin x, cos x], -1) as a static lane concat
    # (handful of XLU lane shifts), then ONE K=4*input_dim MXU pass instead of
    # four K=input_dim partial matmuls summed on the VPU.
    feat = jnp.concatenate([x, x * x, jnp.sin(x), jnp.cos(x)], axis=-1)
    h = jnp.dot(feat.astype(jnp.bfloat16), w1_ref[...],
                preferred_element_type=jnp.float32)
    # NOTE: linear biases b1..b4 intentionally omitted; training-mode BN cancels
    # any constant pre-BN bias exactly (mean(h+b) = mean(h)+b).
    # TODO(synk): eval-mode BatchNorm (running stats) would require b1..b4.
    h = _bn_relu(h, p_ref[0:1, :], p_ref[1:2, :])

    h = jnp.dot(h.astype(jnp.bfloat16), w2_ref[...],
                preferred_element_type=jnp.float32)
    h = _bn_relu(h, p_ref[2:3, :], p_ref[3:4, :])

    h = jnp.dot(h.astype(jnp.bfloat16), w3_ref[...],
                preferred_element_type=jnp.float32)
    h = _bn_relu(h, p_ref[4:5, :128], p_ref[5:6, :128])

    h = jnp.dot(h.astype(jnp.bfloat16), w4_ref[...],
                preferred_element_type=jnp.float32)
    h = _bn_relu(h, p_ref[6:7, :64], p_ref[7:8, :64])

    logits = (jnp.dot(h.astype(jnp.bfloat16), wp_ref[...],
                      preferred_element_type=jnp.float32)
              + p_ref[8:9, :OUT_PAD])
    o_ref[...] = jax.nn.sigmoid(logits)


def _pad_cols(v, n):
    return jnp.pad(v, ((0, 0), (0, n - v.shape[-1])))


def pack_params(params):
    """One-time packing of parameters into kernel operands.

    Hoisted out of the jitted forward (review item 1): bf16 weight casts, wp
    column padding and the [9,256] f32 parameter slab are built once per
    parameter set, so the per-call jitted program is just the pallas_call."""
    slab = jnp.concatenate([
        params["g1"], params["be1"],
        params["g2"], params["be2"],
        _pad_cols(params["g3"], 256), _pad_cols(params["be3"], 256),
        _pad_cols(params["g4"], 256), _pad_cols(params["be4"], 256),
        _pad_cols(params["bp"], 256),
    ], axis=0).astype(jnp.float32)
    return {
        "w1": params["w1"].astype(jnp.bfloat16),                     # (4*in, 256)
        "w2": params["w2"].astype(jnp.bfloat16),                     # (256, 256)
        "w3": params["w3"].astype(jnp.bfloat16),                     # (256, 128)
        "w4": params["w4"].astype(jnp.bfloat16),                     # (128, 64)
        "wp": _pad_cols(params["wp"], OUT_PAD).astype(jnp.bfloat16),  # (64, 128)
        "slab": slab,                                                 # (9, 256)
    }


@functools.partial(jax.jit, static_argnames=("output_dim",))
def bnmlp_forward_batched(xs, packed, output_dim):
    """Forward over N INDEPENDENT logical batches, xs: (N, B, input_dim).

    Each grid step processes one full logical batch, so BatchNorm statistics
    are never split.  Weights/slab stay VMEM-resident via constant index_maps
    (DMA'd once); the batch axis is "parallel" so v7x shards it over its 2
    TensorCores and Pallas double-buffers the x/out DMAs under compute."""
    assert output_dim <= OUT_PAD
    n, b, input_dim = xs.shape
    w1, w2, w3, w4 = packed["w1"], packed["w2"], packed["w3"], packed["w4"]
    wp, slab = packed["wp"], packed["slab"]

    def resident(a):
        nd = a.ndim
        return pl.BlockSpec(a.shape, lambda i, _nd=nd: (0,) * _nd)

    out = pl.pallas_call(
        bnmlp_kernel,
        out_shape=jax.ShapeDtypeStruct((n, b, OUT_PAD), jnp.float32),
        grid=(n,),
        in_specs=[
            pl.BlockSpec((None, b, input_dim), lambda i: (i, 0, 0)),
            resident(w1), resident(w2), resident(w3), resident(w4),
            resident(wp), resident(slab),
        ],
        out_specs=pl.BlockSpec((None, b, OUT_PAD), lambda i: (i, 0, 0)),
        compiler_params=pltpu.CompilerParams(
            dimension_semantics=("parallel",)),
    )(xs, w1, w2, w3, w4, wp, slab)
    # TODO(synk): at scale, consume the padded (.., 128) slab downstream (or
    # emit bf16 output) instead of paying this extra slice pass.
    return out[..., :output_dim]


def bnmlp_forward(x, packed, output_dim):
    """Module-faithful forward for one logical batch, x: (B, input_dim)."""
    return bnmlp_forward_batched(x[None], packed, output_dim)[0]


def init_params(key, input_dim, output_dim):
    """Deterministic init mimicking PyTorch Linear default U(-1/sqrt(fan_in), +).

    Weights are stored [in, out]; BN gamma=1, beta=0 (fresh BatchNorm1d).
    b1..b4 exist in the module but the kernel ignores them — training-mode BN
    cancels them exactly."""
    dims = [(input_dim * 4, 256), (256, 256), (256, 128), (128, 64), (64, output_dim)]
    names = ["1", "2", "3", "4", "p"]
    params = {}
    for (fan_in, fan_out), name in zip(dims, names):
        key, kw, kb = jax.random.split(key, 3)
        bound = 1.0 / jnp.sqrt(fan_in)
        params[f"w{name}"] = jax.random.uniform(
            kw, (fan_in, fan_out), jnp.float32, -bound, bound)
        params[f"b{name}"] = jax.random.uniform(
            kb, (1, fan_out), jnp.float32, -bound, bound)
        if name != "p":
            params[f"g{name}"] = jnp.ones((1, fan_out), jnp.float32)
            params[f"be{name}"] = jnp.zeros((1, fan_out), jnp.float32)
    return params


def bnmlp_reference_f32(x, params):
    """PyTorch-faithful f32 reference (concat, pre-BN biases included)."""
    feat = jnp.concatenate([x, x * x, jnp.sin(x), jnp.cos(x)], axis=-1)

    def bn_relu(h, g, be):
        mean = jnp.mean(h, axis=0, keepdims=True)
        var = jnp.mean((h - mean) ** 2, axis=0, keepdims=True)
        return jnp.maximum((h - mean) / jnp.sqrt(var + BN_EPS) * g + be, 0.0)

    h = bn_relu(feat @ params["w1"] + params["b1"], params["g1"], params["be1"])
    h = bn_relu(h @ params["w2"] + params["b2"], params["g2"], params["be2"])
    h = bn_relu(h @ params["w3"] + params["b3"], params["g3"], params["be3"])
    h = bn_relu(h @ params["w4"] + params["b4"], params["g4"], params["be4"])
    return jax.nn.sigmoid(h @ params["wp"] + params["bp"])


def bnmlp_reference_mixed(x, params):
    """Op-for-op mirror of the kernel (bf16 matmul operands, f32 accumulation,
    fused BN, no pre-BN biases) for a tight numerical check."""
    def mm(a, w):
        return jnp.dot(a.astype(jnp.bfloat16), w.astype(jnp.bfloat16),
                       preferred_element_type=jnp.float32)

    x = x.astype(jnp.float32)
    feat = jnp.concatenate([x, x * x, jnp.sin(x), jnp.cos(x)], axis=-1)
    h = _bn_relu(mm(feat, params["w1"]), params["g1"], params["be1"])
    h = _bn_relu(mm(h, params["w2"]), params["g2"], params["be2"])
    h = _bn_relu(mm(h, params["w3"]), params["g3"], params["be3"])
    h = _bn_relu(mm(h, params["w4"]), params["g4"], params["be4"])
    return jax.nn.sigmoid(mm(h, params["wp"]) + params["bp"])


if __name__ == "__main__":
    key = jax.random.PRNGKey(0)
    k_params, k_x, k_xs = jax.random.split(key, 3)

    batch = 8
    input_dim = 4      # expanded to 16 features by [x, x^2, sin x, cos x]
    output_dim = 8
    n_batches = 4      # independent batches for the gridded path

    params = init_params(k_params, input_dim, output_dim)
    packed = pack_params(params)   # one-time packing, outside the jitted path

    # --- single logical batch (module-faithful forward) ----------------------
    x = jax.random.normal(k_x, (batch, input_dim), jnp.float32)
    out = jax.block_until_ready(bnmlp_forward(x, packed, output_dim))
    assert out.shape == (batch, output_dim)

    # Tight check vs an op-for-op mixed-precision mirror of the kernel math.
    ref_tight = bnmlp_reference_mixed(x, params)
    assert jnp.allclose(out, ref_tight, atol=2e-3, rtol=2e-3), \
        "mismatch vs mixed-precision mirror reference"

    # Loose check vs the PyTorch-faithful f32 reference (bf16 weights only
    # perturb the sigmoid output at the ~1e-2 level).
    ref_f32 = bnmlp_reference_f32(x, params)
    assert jnp.allclose(out, ref_f32, atol=5e-2), "mismatch vs f32 module reference"

    # --- N independent batches through the grid (weights stay VMEM-resident) -
    xs = jax.random.normal(k_xs, (n_batches, batch, input_dim), jnp.float32)
    out_b = jax.block_until_ready(bnmlp_forward_batched(xs, packed, output_dim))
    assert out_b.shape == (n_batches, batch, output_dim)
    ref_b = jax.vmap(lambda xb: bnmlp_reference_mixed(xb, params))(xs)
    assert jnp.allclose(out_b, ref_b, atol=2e-3, rtol=2e-3), \
        "mismatch vs vmapped mixed-precision reference (gridded path)"

    print("KERNEL_OK")
</pallas_src>

<mosaic_0001>
module attributes {stable_mosaic.version = 11 : i64} {
  func.func @bnmlp_kernel(%arg0: i32, %arg1: memref<1x8x4xf32, #tpu.memory_space<vmem>>, %arg2: memref<16x256xbf16, #tpu.memory_space<vmem>>, %arg3: memref<256x256xbf16, #tpu.memory_space<vmem>>, %arg4: memref<256x128xbf16, #tpu.memory_space<vmem>>, %arg5: memref<128x64xbf16, #tpu.memory_space<vmem>>, %arg6: memref<64x128xbf16, #tpu.memory_space<vmem>>, %arg7: memref<9x256xf32, #tpu.memory_space<vmem>>, %arg8: memref<1x8x128xf32, #tpu.memory_space<vmem>>) attributes {dimension_semantics = [#tpu.dimension_semantics<parallel>], iteration_bounds = array<i64: 1>, scalar_prefetch = 0 : i64, scratch_operands = 0 : i64, tpu.core_type = #tpu.core_type<tc>, window_params = [{transform_indices = @transform_0, window_bounds = array<i64: 1, 8, 4>}, {pipeline_mode = #tpu.pipeline_mode<synchronous>, transform_indices = @transform_1, window_bounds = array<i64: 16, 256>}, {pipeline_mode = #tpu.pipeline_mode<synchronous>, transform_indices = @transform_2, window_bounds = array<i64: 256, 256>}, {pipeline_mode = #tpu.pipeline_mode<synchronous>, transform_indices = @transform_3, window_bounds = array<i64: 256, 128>}, {pipeline_mode = #tpu.pipeline_mode<synchronous>, transform_indices = @transform_4, window_bounds = array<i64: 128, 64>}, {pipeline_mode = #tpu.pipeline_mode<synchronous>, transform_indices = @transform_5, window_bounds = array<i64: 64, 128>}, {pipeline_mode = #tpu.pipeline_mode<synchronous>, transform_indices = @transform_6, window_bounds = array<i64: 9, 256>}, {transform_indices = @transform_7, window_bounds = array<i64: 1, 8, 128>}]} {
    %c0 = arith.constant 0 : index
    %c0_0 = arith.constant 0 : index
    %c0_1 = arith.constant 0 : index
    %0 = vector.load %arg1[%c0, %c0_0, %c0_1] : memref<1x8x4xf32, #tpu.memory_space<vmem>>, vector<1x8x4xf32>
    %1 = vector.shape_cast %0 : vector<1x8x4xf32> to vector<8x4xf32>
    %2 = arith.mulf %1, %1 : vector<8x4xf32>
    %3 = math.sin %1 : vector<8x4xf32>
    %4 = math.cos %1 : vector<8x4xf32>
    %5 = tpu.concatenate %1, %2, %3, %4 in 1 : vector<8x4xf32>, vector<8x4xf32>, vector<8x4xf32>, vector<8x4xf32> -> vector<8x16xf32>
    %6 = arith.truncf %5 : vector<8x16xf32> to vector<8x16xbf16>
    %c0_2 = arith.constant 0 : index
    %c0_3 = arith.constant 0 : index
    %7 = vector.load %arg2[%c0_2, %c0_3] : memref<16x256xbf16, #tpu.memory_space<vmem>>, vector<16x256xbf16>
    %cst = arith.constant dense<0.000000e+00> : vector<8x256xf32>
    %8 = tpu.matmul %6, %7, %cst {dimension_numbers = #tpu.dot_dimension_numbers<[1], [0], [0], [1], [0, 0, 1, 1], [], []>} : vector<8x16xbf16>, vector<16x256xbf16>, vector<8x256xf32> -> vector<8x256xf32>
    %c0_4 = arith.constant 0 : index
    %c0_5 = arith.constant 0 : index
    %9 = vector.load %arg7[%c0_4, %c0_5] : memref<9x256xf32, #tpu.memory_space<vmem>>, vector<1x256xf32>
    %c1 = arith.constant 1 : index
    %c0_6 = arith.constant 0 : index
    %10 = vector.load %arg7[%c1, %c0_6] : memref<9x256xf32, #tpu.memory_space<vmem>>, vector<1x256xf32>
    %cst_7 = arith.constant dense<0.000000e+00> : vector<256xf32>
    %11 = vector.multi_reduction <add>, %8, %cst_7 [0] : vector<8x256xf32> to vector<256xf32>
    %12 = vector.shape_cast %11 : vector<256xf32> to vector<1x256xf32>
    %cst_8 = arith.constant 8.000000e+00 : f32
    %13 = vector.broadcast %cst_8 : f32 to vector<1x256xf32>
    %14 = arith.divf %12, %13 : vector<1x256xf32>
    %15 = vector.broadcast %14 : vector<1x256xf32> to vector<8x256xf32>
    %16 = arith.subf %8, %15 : vector<8x256xf32>
    %17 = arith.mulf %16, %16 : vector<8x256xf32>
    %cst_9 = arith.constant dense<0.000000e+00> : vector<256xf32>
    %18 = vector.multi_reduction <add>, %17, %cst_9 [0] : vector<8x256xf32> to vector<256xf32>
    %19 = vector.shape_cast %18 : vector<256xf32> to vector<1x256xf32>
    %cst_10 = arith.constant 8.000000e+00 : f32
    %20 = vector.broadcast %cst_10 : f32 to vector<1x256xf32>
    %21 = arith.divf %19, %20 : vector<1x256xf32>
    %cst_11 = arith.constant 9.99999974E-6 : f32
    %22 = vector.broadcast %cst_11 : f32 to vector<1x256xf32>
    %23 = arith.addf %21, %22 : vector<1x256xf32>
    %24 = math.rsqrt %23 : vector<1x256xf32>
    %25 = arith.mulf %9, %24 : vector<1x256xf32>
    %26 = vector.broadcast %25 : vector<1x256xf32> to vector<8x256xf32>
    %27 = arith.mulf %16, %26 : vector<8x256xf32>
    %28 = vector.broadcast %10 : vector<1x256xf32> to vector<8x256xf32>
    %29 = arith.addf %27, %28 : vector<8x256xf32>
    %cst_12 = arith.constant 0.000000e+00 : f32
    %30 = vector.broadcast %cst_12 : f32 to vector<8x256xf32>
    %31 = arith.maximumf %29, %30 : vector<8x256xf32>
    %32 = arith.truncf %31 : vector<8x256xf32> to vector<8x256xbf16>
    %c0_13 = arith.constant 0 : index
    %c0_14 = arith.constant 0 : index
    %33 = vector.load %arg3[%c0_13, %c0_14] : memref<256x256xbf16, #tpu.memory_space<vmem>>, vector<256x256xbf16>
    %cst_15 = arith.constant dense<0.000000e+00> : vector<8x256xf32>
    %34 = tpu.matmul %32, %33, %cst_15 {dimension_numbers = #tpu.dot_dimension_numbers<[1], [0], [0], [1], [0, 0, 1, 1], [], []>} : vector<8x256xbf16>, vector<256x256xbf16>, vector<8x256xf32> -> vector<8x256xf32>
    %c2 = arith.constant 2 : index
    %c0_16 = arith.constant 0 : index
    %35 = vector.load %arg7[%c2, %c0_16] : memref<9x256xf32, #tpu.memory_space<vmem>>, vector<1x256xf32>
    %c3 = arith.constant 3 : index
    %c0_17 = arith.constant 0 : index
    %36 = vector.load %arg7[%c3, %c0_17] : memref<9x256xf32, #tpu.memory_space<vmem>>, vector<1x256xf32>
    %cst_18 = arith.constant dense<0.000000e+00> : vector<256xf32>
    %37 = vector.multi_reduction <add>, %34, %cst_18 [0] : vector<8x256xf32> to vector<256xf32>
    %38 = vector.shape_cast %37 : vector<256xf32> to vector<1x256xf32>
    %cst_19 = arith.constant 8.000000e+00 : f32
    %39 = vector.broadcast %cst_19 : f32 to vector<1x256xf32>
    %40 = arith.divf %38, %39 : vector<1x256xf32>
    %41 = vector.broadcast %40 : vector<1x256xf32> to vector<8x256xf32>
    %42 = arith.subf %34, %41 : vector<8x256xf32>
    %43 = arith.mulf %42, %42 : vector<8x256xf32>
    %cst_20 = arith.constant dense<0.000000e+00> : vector<256xf32>
    %44 = vector.multi_reduction <add>, %43, %cst_20 [0] : vector<8x256xf32> to vector<256xf32>
    %45 = vector.shape_cast %44 : vector<256xf32> to vector<1x256xf32>
    %cst_21 = arith.constant 8.000000e+00 : f32
    %46 = vector.broadcast %cst_21 : f32 to vector<1x256xf32>
    %47 = arith.divf %45, %46 : vector<1x256xf32>
    %cst_22 = arith.constant 9.99999974E-6 : f32
    %48 = vector.broadcast %cst_22 : f32 to vector<1x256xf32>
    %49 = arith.addf %47, %48 : vector<1x256xf32>
    %50 = math.rsqrt %49 : vector<1x256xf32>
    %51 = arith.mulf %35, %50 : vector<1x256xf32>
    %52 = vector.broadcast %51 : vector<1x256xf32> to vector<8x256xf32>
    %53 = arith.mulf %42, %52 : vector<8x256xf32>
    %54 = vector.broadcast %36 : vector<1x256xf32> to vector<8x256xf32>
    %55 = arith.addf %53, %54 : vector<8x256xf32>
    %cst_23 = arith.constant 0.000000e+00 : f32
    %56 = vector.broadcast %cst_23 : f32 to vector<8x256xf32>
    %57 = arith.maximumf %55, %56 : vector<8x256xf32>
    %58 = arith.truncf %57 : vector<8x256xf32> to vector<8x256xbf16>
    %c0_24 = arith.constant 0 : index
    %c0_25 = arith.constant 0 : index
    %59 = vector.load %arg4[%c0_24, %c0_25] : memref<256x128xbf16, #tpu.memory_space<vmem>>, vector<256x128xbf16>
    %cst_26 = arith.constant dense<0.000000e+00> : vector<8x128xf32>
    %60 = tpu.matmul %58, %59, %cst_26 {dimension_numbers = #tpu.dot_dimension_numbers<[1], [0], [0], [1], [0, 0, 1, 1], [], []>} : vector<8x256xbf16>, vector<256x128xbf16>, vector<8x128xf32> -> vector<8x128xf32>
    %c4 = arith.constant 4 : index
    %c0_27 = arith.constant 0 : index
    %61 = vector.load %arg7[%c4, %c0_27] : memref<9x256xf32, #tpu.memory_space<vmem>>, vector<1x128xf32>
    %c5 = arith.constant 5 : index
    %c0_28 = arith.constant 0 : index
    %62 = vector.load %arg7[%c5, %c0_28] : memref<9x256xf32, #tpu.memory_space<vmem>>, vector<1x128xf32>
    %cst_29 = arith.constant dense<0.000000e+00> : vector<128xf32>
    %63 = vector.multi_reduction <add>, %60, %cst_29 [0] : vector<8x128xf32> to vector<128xf32>
    %64 = vector.shape_cast %63 : vector<128xf32> to vector<1x128xf32>
    %cst_30 = arith.constant 8.000000e+00 : f32
    %65 = vector.broadcast %cst_30 : f32 to vector<1x128xf32>
    %66 = arith.divf %64, %65 : vector<1x128xf32>
    %67 = vector.broadcast %66 : vector<1x128xf32> to vector<8x128xf32>
    %68 = arith.subf %60, %67 : vector<8x128xf32>
    %69 = arith.mulf %68, %68 : vector<8x128xf32>
    %cst_31 = arith.constant dense<0.000000e+00> : vector<128xf32>
    %70 = vector.multi_reduction <add>, %69, %cst_31 [0] : vector<8x128xf32> to vector<128xf32>
    %71 = vector.shape_cast %70 : vector<128xf32> to vector<1x128xf32>
    %cst_32 = arith.constant 8.000000e+00 : f32
    %72 = vector.broadcast %cst_32 : f32 to vector<1x128xf32>
    %73 = arith.divf %71, %72 : vector<1x128xf32>
    %cst_33 = arith.constant 9.99999974E-6 : f32
    %74 = vector.broadcast %cst_33 : f32 to vector<1x128xf32>
    %75 = arith.addf %73, %74 : vector<1x128xf32>
    %76 = math.rsqrt %75 : vector<1x128xf32>
    %77 = arith.mulf %61, %76 : vector<1x128xf32>
    %78 = vector.broadcast %77 : vector<1x128xf32> to vector<8x128xf32>
    %79 = arith.mulf %68, %78 : vector<8x128xf32>
    %80 = vector.broadcast %62 : vector<1x128xf32> to vector<8x128xf32>
    %81 = arith.addf %79, %80 : vector<8x128xf32>
    %cst_34 = arith.constant 0.000000e+00 : f32
    %82 = vector.broadcast %cst_34 : f32 to vector<8x128xf32>
    %83 = arith.maximumf %81, %82 : vector<8x128xf32>
    %84 = arith.truncf %83 : vector<8x128xf32> to vector<8x128xbf16>
    %c0_35 = arith.constant 0 : index
    %c0_36 = arith.constant 0 : index
    %85 = vector.load %arg5[%c0_35, %c0_36] : memref<128x64xbf16, #tpu.memory_space<vmem>>, vector<128x64xbf16>
    %cst_37 = arith.constant dense<0.000000e+00> : vector<8x64xf32>
    %86 = tpu.matmul %84, %85, %cst_37 {dimension_numbers = #tpu.dot_dimension_numbers<[1], [0], [0], [1], [0, 0, 1, 1], [], []>} : vector<8x128xbf16>, vector<128x64xbf16>, vector<8x64xf32> -> vector<8x64xf32>
    %c6 = arith.constant 6 : index
    %c0_38 = arith.constant 0 : index
    %87 = vector.load %arg7[%c6, %c0_38] : memref<9x256xf32, #tpu.memory_space<vmem>>, vector<1x64xf32>
    %c7 = arith.constant 7 : index
    %c0_39 = arith.constant 0 : index
    %88 = vector.load %arg7[%c7, %c0_39] : memref<9x256xf32, #tpu.memory_space<vmem>>, vector<1x64xf32>
    %cst_40 = arith.constant dense<0.000000e+00> : vector<64xf32>
    %89 = vector.multi_reduction <add>, %86, %cst_40 [0] : vector<8x64xf32> to vector<64xf32>
    %90 = vector.shape_cast %89 : vector<64xf32> to vector<1x64xf32>
    %cst_41 = arith.constant 8.000000e+00 : f32
    %91 = vector.broadcast %cst_41 : f32 to vector<1x64xf32>
    %92 = arith.divf %90, %91 : vector<1x64xf32>
    %93 = vector.broadcast %92 : vector<1x64xf32> to vector<8x64xf32>
    %94 = arith.subf %86, %93 : vector<8x64xf32>
    %95 = arith.mulf %94, %94 : vector<8x64xf32>
    %cst_42 = arith.constant dense<0.000000e+00> : vector<64xf32>
    %96 = vector.multi_reduction <add>, %95, %cst_42 [0] : vector<8x64xf32> to vector<64xf32>
    %97 = vector.shape_cast %96 : vector<64xf32> to vector<1x64xf32>
    %cst_43 = arith.constant 8.000000e+00 : f32
    %98 = vector.broadcast %cst_43 : f32 to vector<1x64xf32>
    %99 = arith.divf %97, %98 : vector<1x64xf32>
    %cst_44 = arith.constant 9.99999974E-6 : f32
    %100 = vector.broadcast %cst_44 : f32 to vector<1x64xf32>
    %101 = arith.addf %99, %100 : vector<1x64xf32>
    %102 = math.rsqrt %101 : vector<1x64xf32>
    %103 = arith.mulf %87, %102 : vector<1x64xf32>
    %104 = vector.broadcast %103 : vector<1x64xf32> to vector<8x64xf32>
    %105 = arith.mulf %94, %104 : vector<8x64xf32>
    %106 = vector.broadcast %88 : vector<1x64xf32> to vector<8x64xf32>
    %107 = arith.addf %105, %106 : vector<8x64xf32>
    %cst_45 = arith.constant 0.000000e+00 : f32
    %108 = vector.broadcast %cst_45 : f32 to vector<8x64xf32>
    %109 = arith.maximumf %107, %108 : vector<8x64xf32>
    %110 = arith.truncf %109 : vector<8x64xf32> to vector<8x64xbf16>
    %c0_46 = arith.constant 0 : index
    %c0_47 = arith.constant 0 : index
    %111 = vector.load %arg6[%c0_46, %c0_47] : memref<64x128xbf16, #tpu.memory_space<vmem>>, vector<64x128xbf16>
    %cst_48 = arith.constant dense<0.000000e+00> : vector<8x128xf32>
    %112 = tpu.matmul %110, %111, %cst_48 {dimension_numbers = #tpu.dot_dimension_numbers<[1], [0], [0], [1], [0, 0, 1, 1], [], []>} : vector<8x64xbf16>, vector<64x128xbf16>, vector<8x128xf32> -> vector<8x128xf32>
    %c8 = arith.constant 8 : index
    %c0_49 = arith.constant 0 : index
    %113 = vector.load %arg7[%c8, %c0_49] : memref<9x256xf32, #tpu.memory_space<vmem>>, vector<1x128xf32>
    %114 = vector.broadcast %113 : vector<1x128xf32> to vector<8x128xf32>
    %115 = arith.addf %112, %114 : vector<8x128xf32>
    %116 = arith.negf %115 : vector<8x128xf32>
    %117 = math.exp %116 : vector<8x128xf32>
    %cst_50 = arith.constant 1.000000e+00 : f32
    %118 = vector.broadcast %cst_50 : f32 to vector<8x128xf32>
    %119 = arith.addf %118, %117 : vector<8x128xf32>
    %120 = arith.divf %118, %119 : vector<8x128xf32>
    %c0_51 = arith.constant 0 : index
    %c0_52 = arith.constant 0 : index
    %c0_53 = arith.constant 0 : index
    %121 = vector.load %arg8[%c0_51, %c0_52, %c0_53] : memref<1x8x128xf32, #tpu.memory_space<vmem>>, vector<1x8x128xf32>
    %122 = vector.shape_cast %121 : vector<1x8x128xf32> to vector<8x128xf32>
    %123 = vector.shape_cast %120 : vector<8x128xf32> to vector<1x8x128xf32>
    tpu.vector_store %arg8[%c0_51, %c0_52, %c0_53], %123 {strides = array<i32>} : memref<1x8x128xf32, #tpu.memory_space<vmem>>, vector<1x8x128xf32>,
    return
  }
  func.func @transform_0(%arg0: i32) -> (i32, i32, i32) {
    %c0_i32 = arith.constant 0 : i32
    %c0_i32_0 = arith.constant 0 : i32
    %c0_i32_1 = arith.constant 0 : i32
    return %arg0, %c0_i32, %c0_i32_0 : i32, i32, i32
  }
  func.func @transform_1(%arg0: i32) -> (i32, i32) {
    %c0_i32 = arith.constant 0 : i32
    %c0_i32_0 = arith.constant 0 : i32
    %c0_i32_1 = arith.constant 0 : i32
    return %c0_i32, %c0_i32_0 : i32, i32
  }
  func.func @transform_2(%arg0: i32) -> (i32, i32) {
    %c0_i32 = arith.constant 0 : i32
    %c0_i32_0 = arith.constant 0 : i32
    %c0_i32_1 = arith.constant 0 : i32
    return %c0_i32, %c0_i32_0 : i32, i32
  }
  func.func @transform_3(%arg0: i32) -> (i32, i32) {
    %c0_i32 = arith.constant 0 : i32
    %c0_i32_0 = arith.constant 0 : i32
    %c0_i32_1 = arith.constant 0 : i32
    return %c0_i32, %c0_i32_0 : i32, i32
  }
  func.func @transform_4(%arg0: i32) -> (i32, i32) {
    %c0_i32 = arith.constant 0 : i32
    %c0_i32_0 = arith.constant 0 : i32
    %c0_i32_1 = arith.constant 0 : i32
    return %c0_i32, %c0_i32_0 : i32, i32
  }
  func.func @transform_5(%arg0: i32) -> (i32, i32) {
    %c0_i32 = arith.constant 0 : i32
    %c0_i32_0 = arith.constant 0 : i32
    %c0_i32_1 = arith.constant 0 : i32
    return %c0_i32, %c0_i32_0 : i32, i32
  }
  func.func @transform_6(%arg0: i32) -> (i32, i32) {
    %c0_i32 = arith.constant 0 : i32
    %c0_i32_0 = arith.constant 0 : i32
    %c0_i32_1 = arith.constant 0 : i32
    return %c0_i32, %c0_i32_0 : i32, i32
  }
  func.func @transform_7(%arg0: i32) -> (i32, i32, i32) {
    %c0_i32 = arith.constant 0 : i32
    %c0_i32_0 = arith.constant 0 : i32
    %c0_i32_1 = arith.constant 0 : i32
    return %arg0, %c0_i32, %c0_i32_0 : i32, i32, i32
  }
}

</mosaic_0001>

<llo_original>
// kernel: bnmlp_forward_batched.1
$region0: #{bnmlp_forward_batched.1}
  #allocation0 [shape = 'u32[]', space=smem, size = 0x4, offset = 0x4, fixed_abs, tag = 'smem constant byte address 0x4 - core index']
  #allocation1 [shape = 'u32[144,128]{1,0:T(1,128)}', space=vmem, size = 0x12000, scoped, tag = 'internal scratch']
  %s0 = inlined_call_operand.vmem [shape: f32[1,8,4], index: 0, kind: input, shape index: {}]
  %s1 = inlined_call_operand.vmem [shape: bf16[16,256], index: 1, kind: input, shape index: {}]
  %s2 = inlined_call_operand.hbm [shape: bf16[256,256], index: 2, kind: input, shape index: {}]
  %s3 = inlined_call_operand.hbm [shape: bf16[256,128], index: 3, kind: input, shape index: {}]
  %s4 = inlined_call_operand.vmem [shape: bf16[128,64], index: 4, kind: input, shape index: {}]
  %s5 = inlined_call_operand.vmem [shape: bf16[64,128], index: 5, kind: input, shape index: {}]
  %s6 = inlined_call_operand.vmem [shape: f32[9,256], index: 6, kind: input, shape index: {}]
  %s7 = inlined_call_operand.hbm [shape: f32[1,8,128], index: 7, kind: output, shape index: {}]
  %s8 = sld [smem:[#allocation0]]
  $region46: #{bnmlp_forward_batched.1} parent=0
    _
  %s10 = ssub.s32 1, %s8
  %s11 = scalar_select 0, %s10, %s8
  $region1: #{bnmlp_forward_batched.1} parent=0
    #allocation2 [shape = 'u8[131072]{0}', space=vmem, size = 0x20000, scoped, tag = 'input window, operand 2, single buffered']
    #allocation3 [shape = 's32[1]{0}', space=sflag, size = 0x4, scoped, tag = 'scoped memory for bnmlp_forward_batched.1']
    #allocation4 [shape = 's32[1]{0}', space=sflag, size = 0x4, scoped, tag = 'scoped memory for bnmlp_forward_batched.1']
    #allocation5 [shape = 'u8[65536]{0}', space=vmem, size = 0x10000, scoped, tag = 'input window, operand 3, single buffered']
    #allocation6 [shape = 's32[1]{0}', space=sflag, size = 0x4, scoped, tag = 'scoped memory for bnmlp_forward_batched.1']
    #allocation7 [shape = 'u8[4096]{0}', space=vmem, size = 0x1000, scoped, tag = 'output window, operand 0, single buffered']
    %12 = vsyncpa [#allocation3], 0
    %13 = vsyncpa [#allocation6], 0
    %14 = vsyncpa [#allocation4], 0
    // Predicated region
    $region2: #{bnmlp_forward_batched.1} parent=1 // pred_check
      _
    $region3: #{bnmlp_forward_batched.1} parent=1 // pred_check_branch
      %16 = sbr.rel (0) target = $region5
    $region4: #{bnmlp_forward_batched.1} parent=1 // pred_region
      _
    $region5: #{bnmlp_forward_batched.1} parent=1 // pred_fallthru
      _
    // Predicated region
    $region6: #{bnmlp_forward_batched.1} parent=1 // pred_check
      _
    $region7: #{bnmlp_forward_batched.1} parent=1 // pred_check_branch
      %18 = sbr.rel (0) target = $region9
    $region8: #{bnmlp_forward_batched.1} parent=1 // pred_region
      _
    $region9: #{bnmlp_forward_batched.1} parent=1 // pred_fallthru
      _
    // Predicated region
    $region10: #{bnmlp_forward_batched.1} parent=1 // pred_check
      _
    $region11: #{bnmlp_forward_batched.1} parent=1 // pred_check_branch
      %20 = sbr.rel (0) target = $region13
    $region12: #{bnmlp_forward_batched.1} parent=1 // pred_region
      %s22 = ssub.s32 4096, 4096
      %23 = vsyncadd [#allocation3], %s22
      %s24 = sshll.u32 [#allocation2], 4
      %s25 = int_to_ptr.vmem [resolvable:$true] %s24
      %30 = dma.hbm_to_vmem [thread:$0]  %s2, 4096, %s25, [#allocation3], 128, 128, 8
    $region13: #{bnmlp_forward_batched.1} parent=1 // pred_fallthru
      _
    // Predicated region
    $region14: #{bnmlp_forward_batched.1} parent=1 // pred_check
      _
    $region15: #{bnmlp_forward_batched.1} parent=1 // pred_check_branch
      %32 = sbr.rel (0) target = $region17
    $region16: #{bnmlp_forward_batched.1} parent=1 // pred_region
      %s34 = ssub.s32 2048, 2048
      %35 = vsyncadd [#allocation6], %s34
      %s36 = sshll.u32 [#allocation5], 4
      %s37 = int_to_ptr.vmem [resolvable:$true] %s36
      %42 = dma.hbm_to_vmem [thread:$0]  %s3, 2048, %s37, [#allocation6], 64, 64, 4
    $region17: #{bnmlp_forward_batched.1} parent=1 // pred_fallthru
      _
    // Predicated region
    $region18: #{bnmlp_forward_batched.1} parent=1 // pred_check
      _
    $region19: #{bnmlp_forward_batched.1} parent=1 // pred_check_branch
      %44 = sbr.rel (0) target = $region21
    $region20: #{bnmlp_forward_batched.1} parent=1 // pred_region
      _
    $region21: #{bnmlp_forward_batched.1} parent=1 // pred_fallthru
      _
    // Predicated region
    $region22: #{bnmlp_forward_batched.1} parent=1 // pred_check
      _
    $region23: #{bnmlp_forward_batched.1} parent=1 // pred_check_branch
      %46 = sbr.rel (0) target = $region25
    $region24: #{bnmlp_forward_batched.1} parent=1 // pred_region
      _
    $region25: #{bnmlp_forward_batched.1} parent=1 // pred_fallthru
      _
    // Predicated region
    $region26: #{bnmlp_forward_batched.1} parent=1 // pred_check
      _
    $region27: #{bnmlp_forward_batched.1} parent=1 // pred_check_branch
      %48 = sbr.rel (0) target = $region29
    $region28: #{bnmlp_forward_batched.1} parent=1 // pred_region
      _
    $region29: #{bnmlp_forward_batched.1} parent=1 // pred_fallthru
      _
    // Predicated region
    $region30: #{bnmlp_forward_batched.1} parent=1 // pred_check
      _
    $region31: #{bnmlp_forward_batched.1} parent=1 // pred_check_branch
      %50 = sbr.rel (0) target = $region33
    $region32: #{bnmlp_forward_batched.1} parent=1 // pred_region
      %51 = dma.done [#allocation3], 4096
    $region33: #{bnmlp_forward_batched.1} parent=1 // pred_fallthru
      _
    // Predicated region
    $region34: #{bnmlp_forward_batched.1} parent=1 // pred_check
      _
    $region35: #{bnmlp_forward_batched.1} parent=1 // pred_check_branch
      %53 = sbr.rel (0) target = $region37
    $region36: #{bnmlp_forward_batched.1} parent=1 // pred_region
      %54 = dma.done [#allocation6], 2048
    $region37: #{bnmlp_forward_batched.1} parent=1 // pred_fallthru
      _
    %v56 = vld [vmem:[%s0] sm:$0xff]
    %v57 = vmul.f32 %v56, %v56
    %v58 = vand.u32 2147483647, %v56
    %vm59 = vcmp.le.f32.partialorder %v58, 0.7853982
    %vm60 = vcmp.lt.s32.totalorder %v56, 0
    %v61 = vand.u32 %v56, 2139095040
    %v62 = vshrl.u32 %v61, 23
    %v63 = vsub.s32 %v62, 127
    %v64 = vand.u32 2147483647, %v56
    %v65 = vand.u32 %v64, 8388607
    %v66 = vor.u32 %v65, 8388608
    %v67 = vsub.s32 0, %v66
    %v68 = vadd.s32 %v63, 1
    %vm69 = vcmp.gt.s32.totalorder %v68, 0
    %v70 = vsel %vm69, %v68, 0
    %v71 = vshrl.u32 %v70, 5
    %v72 = vand.u32 %v70, 31
    %v73 = vsub.s32 32, %v72
    %v74 = vshrl.u32 683565275, %v73
    %v75 = vshll.u32 683565275, %v72
    %v76 = vshrl.u32 2475754826, %v73
    %v77 = vor.u32 %v75, %v76
    %v78 = vshll.u32 2475754826, %v72
    %v79 = vshrl.u32 2131351028, %v73
    %v80 = vor.u32 %v78, %v79
    %v81 = vshll.u32 2131351028, %v72
    %v82 = vshrl.u32 2102212464, %v73
    %v83 = vor.u32 %v81, %v82
    %v84 = vshll.u32 2102212464, %v72
    %v85 = vshrl.u32 920167782, %v73
    %v86 = vor.u32 %v84, %v85
    %v87 = vshll.u32 920167782, %v72
    %v88 = vshrl.u32 1326507024, %v73
    %v89 = vor.u32 %v87, %v88
    %vm90 = vcmp.lt.s32.totalorder %v71, 1
    %vm91 = vcmp.lt.s32.totalorder %v71, 2
    %vm92 = vcmp.lt.s32.totalorder %v71, 3
    %vm93 = vcmp.lt.s32.totalorder %v71, 4
    %v94 = vsel %vm90, %v74, %v77
    %v95 = vsel %vm93, %v83, 2102212464
    %v96 = vsel %vm92, %v80, %v95
    %v97 = vsel %vm91, %v94, %v96
    %v98 = vsel %vm90, %v77, %v80
    %v99 = vsel %vm93, %v86, 920167782
    %v100 = vsel %vm92, %v83, %v99
    %v101 = vsel %vm91, %v98, %v100
    %v102 = vsel %vm90, %v80, %v83
    %v103 = vsel %vm93, %v89, 1326507024
    %v104 = vsel %vm92, %v86, %v103
    %v105 = vsel %vm91, %v102, %v104
    %v106 = vshll.u32 %v66, 8
    %v107 = vmul.u32.u64.compose %v106, %v105
    %v108 = vextract.low.u32 %v107
    %v109 = vextract.high.u32 %v107
    %v110 = vmul.u32.u64.compose %v106, %v101
    %v111 = vextract.low.u32 %v110
    %v112 = vextract.high.u32 %v110
    %v113 = vmul.u32 %v106, %v97
    %v114 = vadd.s32 %v109, %v111
    %vm115 = vc.u32 %v109, %v111
    %v116 = vadd.s32 %v112, 1
    %v117 = vsel %vm115, %v116, %v112
    %v118 = vadd.s32 %v113, %v117
    %v119 = vadd.s32 %v118, 536870912
    %v120 = vshrl.u32 %v119, 30
    %v121 = vshll.u32 %v120, 30
    %v122 = vsub.s32 %v118, %v121
    %vm123 = vcmp.lt.s32.totalorder %v122, 0
    %v124 = vsub.s32 0, %v122
    %v125 = vsel %vm123, %v124, %v122
    %v126 = vclz %v125
    %v127 = vsub.s32 %v126, 2
    %vm128 = vcmp.gt.s32.totalorder 0, %v127
    %v129 = vsel %vm128, 0, %v127
    %v130 = vsub.s32 32, %v129
    %v131 = vshll.u32 %v122, %v129
    %v132 = vshrl.u32 %v114, %v130
    %v133 = vor.u32 %v131, %v132
    %v134 = vsub.s32 4294967266, %v129
    %v135 = vadd.s32 %v134, 127
    %v136 = vshll.u32 %v135, 23
    %v137 = vor.u32 4788187, %v136
    %v138 = vand.u32 2147483647, %v137
    %v140 = vcvt.s32.f32 %v133
    %v141 = vmul.f32 %v140, %v138
    %v142 = vxor.u32 %v141, 2147483648
    %v143 = vsel %vm60, %v142, %v141
    %v144 = vsub.s32 4, %v120
    %v145 = vsel %vm60, %v144, %v120
    %v146 = vsel %vm59, %v56, %v143
    %v147 = vsel %vm59, 0, %v145
    %v148 = vcosq.f32.pop %v146
    %v149 = vsinq.f32.pop %v146
    %vm150 = vweird.f32 %v56
    %v151 = vadd.s32 %v147, 3
    %v152 = vand.u32 %v151, 3
    %vm153 = vcmp.lt.s32.totalorder %v152, 2
    %vm154 = vcmp.eq.s32.totalorder %v152, 0
    %v155 = vxor.u32 %v149, 2147483648
    %v156 = vsel %vm154, %v148, %v155
    %vm157 = vcmp.eq.s32.totalorder %v152, 2
    %v158 = vxor.u32 %v148, 2147483648
    %v159 = vsel %vm157, %v158, %v149
    %v160 = vsel %vm153, %v156, %v159
    %v161 = vsel %vm150, nan, %v160
    %v162 = vand.u32 2147483647, %v56
    %vm163 = vcmp.le.f32.partialorder %v162, 0.7853982
    %vm164 = vcmp.lt.s32.totalorder %v56, 0
    %v165 = vand.u32 %v56, 2139095040
    %v166 = vshrl.u32 %v165, 23
    %v167 = vsub.s32 %v166, 127
    %v168 = vand.u32 2147483647, %v56
    %v169 = vand.u32 %v168, 8388607
    %v170 = vor.u32 %v169, 8388608
    %v171 = vsub.s32 0, %v170
    %v172 = vadd.s32 %v167, 1
    %vm173 = vcmp.gt.s32.totalorder %v172, 0
    %v174 = vsel %vm173, %v172, 0
    %v175 = vshrl.u32 %v174, 5
    %v176 = vand.u32 %v174, 31
    %v177 = vsub.s32 32, %v176
    %v178 = vshrl.u32 683565275, %v177
    %v179 = vshll.u32 683565275, %v176
    %v180 = vshrl.u32 2475754826, %v177
    %v181 = vor.u32 %v179, %v180
    %v182 = vshll.u32 2475754826, %v176
    %v183 = vshrl.u32 2131351028, %v177
    %v184 = vor.u32 %v182, %v183
    %v185 = vshll.u32 2131351028, %v176
    %v186 = vshrl.u32 2102212464, %v177
    %v187 = vor.u32 %v185, %v186
    %v188 = vshll.u32 2102212464, %v176
    %v189 = vshrl.u32 920167782, %v177
    %v190 = vor.u32 %v188, %v189
    %v191 = vshll.u32 920167782, %v176
    %v192 = vshrl.u32 1326507024, %v177
    %v193 = vor.u32 %v191, %v192
    %vm194 = vcmp.lt.s32.totalorder %v175, 1
    %vm195 = vcmp.lt.s32.totalorder %v175, 2
    %vm196 = vcmp.lt.s32.totalorder %v175, 3
    %vm197 = vcmp.lt.s32.totalorder %v175, 4
    %v198 = vsel %vm194, %v178, %v181
    %v199 = vsel %vm197, %v187, 2102212464
    %v200 = vsel %vm196, %v184, %v199
    %v201 = vsel %vm195, %v198, %v200
    %v202 = vsel %vm194, %v181, %v184
    %v203 = vsel %vm197, %v190, 920167782
    %v204 = vsel %vm196, %v187, %v203
    %v205 = vsel %vm195, %v202, %v204
    %v206 = vsel %vm194, %v184, %v187
    %v207 = vsel %vm197, %v193, 1326507024
    %v208 = vsel %vm196, %v190, %v207
    %v209 = vsel %vm195, %v206, %v208
    %v210 = vshll.u32 %v170, 8
    %v211 = vmul.u32.u64.compose %v210, %v209
    %v212 = vextract.low.u32 %v211
    %v213 = vextract.high.u32 %v211
    %v214 = vmul.u32.u64.compose %v210, %v205
    %v215 = vextract.low.u32 %v214
    %v216 = vextract.high.u32 %v214
    %v217 = vmul.u32 %v210, %v201
    %v218 = vadd.s32 %v213, %v215
    %vm219 = vc.u32 %v213, %v215
    %v220 = vadd.s32 %v216, 1
    %v221 = vsel %vm219, %v220, %v216
    %v222 = vadd.s32 %v217, %v221
    %v223 = vadd.s32 %v222, 536870912
    %v224 = vshrl.u32 %v223, 30
    %v225 = vshll.u32 %v224, 30
    %v226 = vsub.s32 %v222, %v225
    %vm227 = vcmp.lt.s32.totalorder %v226, 0
    %v228 = vsub.s32 0, %v226
    %v229 = vsel %vm227, %v228, %v226
    %v230 = vclz %v229
    %v231 = vsub.s32 %v230, 2
    %vm232 = vcmp.gt.s32.totalorder 0, %v231
    %v233 = vsel %vm232, 0, %v231
    %v234 = vsub.s32 32, %v233
    %v235 = vshll.u32 %v226, %v233
    %v236 = vshrl.u32 %v218, %v234
    %v237 = vor.u32 %v235, %v236
    %v238 = vsub.s32 4294967266, %v233
    %v239 = vadd.s32 %v238, 127
    %v240 = vshll.u32 %v239, 23
    %v241 = vor.u32 4788187, %v240
    %v242 = vand.u32 2147483647, %v241
    %v244 = vcvt.s32.f32 %v237
    %v245 = vmul.f32 %v244, %v242
    %v246 = vxor.u32 %v245, 2147483648
    %v247 = vsel %vm164, %v246, %v245
    %v248 = vsub.s32 4, %v224
    %v249 = vsel %vm164, %v248, %v224
    %v250 = vsel %vm163, %v56, %v247
    %v251 = vsel %vm163, 0, %v249
    %v252 = vcosq.f32.pop %v250
    %v253 = vsinq.f32.pop %v250
    %vm254 = vweird.f32 %v56
    %v255 = vand.u32 %v251, 3
    %vm256 = vcmp.lt.s32.totalorder %v255, 2
    %vm257 = vcmp.eq.s32.totalorder %v255, 0
    %v258 = vxor.u32 %v253, 2147483648
    %v259 = vsel %vm257, %v252, %v258
    %vm260 = vcmp.eq.s32.totalorder %v255, 2
    %v261 = vxor.u32 %v252, 2147483648
    %v262 = vsel %vm260, %v261, %v253
    %v263 = vsel %vm256, %v259, %v262
    %v264 = vsel %vm254, nan, %v263
    %266 = vrot.lane.b32.xlu0 %v57, 4
    %v267 = vpop.permute.xlu0 %266
    %270 = vrot.lane.b32.xlu0 %v161, 8
    %v271 = vpop.permute.xlu0 %270
    %274 = vrot.lane.b32.xlu0 %v264, 12
    %v275 = vpop.permute.xlu0 %274
    %vm277 = vcmask 31744
    %v278 = vsel %vm277, %v56, %v267
    %vm279 = vcmask 64512
    %v280 = vsel %vm279, %v278, %v271
    %vm281 = vcmask 97280
    %v282 = vsel %vm281, %v280, %v275
    %v283 = vpack.c.bf16 %v282, %v282
    %v284 = vld [vmem:[%s1] sm:$0xff]
    %v285 = vld [vmem:[%s1 + $0x8] sm:$0xff]
    %v288 = vunpack.c.l.b16 %v284
    %v289 = vunpack.c.h.b16 %v284
    %v290 = vunpack.c.l.b16 %v285
    %v291 = vunpack.c.h.b16 %v285
    %v292 = vpack.c.b16 %v290, %v288
    %v293 = vpack.c.b16 %v291, %v289
    %vm296 = vcmask 130048
    %v298 = vsel %vm296, %v283, 0
    %300 = vmatprep.subr.bf16.mxu0 %v293
    %301 = vmatpush1.bf16.msra.mxu0 %v292
    %302 = vmatprep.subr.bf16.mxu0 0
    %303 = vmatpush1.bf16.msra.mxu0 0
    %304 = vmatprep.subr.bf16.mxu0 0
    %305 = vmatpush1.bf16.msra.mxu0 0
    %306 = vmatprep.subr.bf16.mxu0 0
    %307 = vmatpush1.bf16.msra.mxu0 0
    %308 = vmatprep.subr.bf16.mxu0 0
    %309 = vmatpush1.bf16.msra.mxu0 0
    %310 = vmatprep.subr.bf16.mxu0 0
    %311 = vmatpush1.bf16.msra.mxu0 0
    %312 = vmatprep.subr.bf16.mxu0 0
    %313 = vmatpush1.bf16.msra.mxu0 0
    %314 = vmatprep.subr.bf16.mxu0 0
    %315 = vmatpush1.bf16.msra.mxu0 0
    %316 = vmatprep.subr.bf16.mxu0 0
    %317 = vmatpush1.bf16.msra.mxu0 0
    %318 = vmatprep.subr.bf16.mxu0 0
    %319 = vmatpush1.bf16.msra.mxu0 0
    %320 = vmatprep.subr.bf16.mxu0 0
    %321 = vmatpush1.bf16.msra.mxu0 0
    %322 = vmatprep.subr.bf16.mxu0 0
    %323 = vmatpush1.bf16.msra.mxu0 0
    %324 = vmatprep.subr.bf16.mxu0 0
    %325 = vmatpush1.bf16.msra.mxu0 0
    %326 = vmatprep.subr.bf16.mxu0 0
    %327 = vmatpush1.bf16.msra.mxu0 0
    %328 = vmatprep.subr.bf16.mxu0 0
    %329 = vmatpush1.bf16.msra.mxu0 0
    %330 = vmatprep.subr.bf16.mxu0 0
    %331 = vmatpush1.bf16.msra.mxu0 0
    %332 = vmatprep.mubr.bf16.mxu0 0
    %333 = vmatmul.mubr.bf16.gmra.mrb[0].mxu0 %v298
    %v334 = vpop.f32.mrb[0].mxu0
    %v335 = vadd.f32 0.0, %v334
    %v336 = vpop.f32.mrb[0].mxu0
    %v337 = vadd.f32 0.0, %v336
    %v338 = vpop.f32.mrb[0].mxu0
    %v339 = vpop.f32.mrb[0].mxu0
    %340 = vdwg.mxu0
    %v341 = vld [vmem:[%s6] ss:$8 sm:$0x3]
    %s342 = scalar_lea.vmem %s6, 1
    %v343 = vld [vmem:[%s342] ss:$8 sm:$0x3]
    %v344 = vrot.slane %v335, 4
    %v345 = vadd.f32 %v335, %v344
    %v346 = vrot.slane %v345, 2
    %v347 = vadd.f32 %v345, %v346
    %v348 = vrot.slane %v347, 1
    %v349 = vadd.f32 %v347, %v348
    %v350 = vrot.slane %v337, 4
    %v351 = vadd.f32 %v337, %v350
    %v352 = vrot.slane %v351, 2
    %v353 = vadd.f32 %v351, %v352
    %v354 = vrot.slane %v353, 1
    %v355 = vadd.f32 %v353, %v354
    %v356 = vrcp.pop 8.0
    %v357 = vmul.f32 %v349, %v356
    %v358 = vmul.f32 %v355, %v356
    %v359 = vsub.f32 %v335, %v357
    %v360 = vsub.f32 %v337, %v358
    %v361 = vmul.f32 %v359, %v359
    %v362 = vmul.f32 %v360, %v360
    %v363 = vrot.slane %v361, 4
    %v364 = vadd.f32 %v361, %v363
    %v365 = vrot.slane %v364, 2
    %v366 = vadd.f32 %v364, %v365
    %v367 = vrot.slane %v366, 1
    %v368 = vadd.f32 %v366, %v367
    %v369 = vrot.slane %v362, 4
    %v370 = vadd.f32 %v362, %v369
    %v371 = vrot.slane %v370, 2
    %v372 = vadd.f32 %v370, %v371
    %v373 = vrot.slane %v372, 1
    %v374 = vadd.f32 %v372, %v373
    %v375 = vmul.f32 %v368, %v356
    %v376 = vmul.f32 %v374, %v356
    %v377 = vadd.f32 %v375, 1e-05
    %v378 = vadd.f32 %v376, 1e-05
    %v379 = vrsqrt.pop %v377
    %v380 = vrsqrt.pop %v378
    %v383 = vcombine.low %v379, %v380
    %v385 = vunpack.c.l.s4 1966171168
    %v386 = vunpack.c.0.s8 %v385
    %v387 = vlaneseq
    %v388 = vshrl.u32 %v387, 7
    %v389 = vsub.s32 %v386, %v388
    %v390 = vrot.slane %v383, %v389
    %v392 = vunpack.c.l.s4 1966171168
    %v393 = vunpack.c.0.s8 %v392
    %v394 = vlaneseq
    %v395 = vshrl.u32 %v394, 7
    %v396 = vsub.s32 %v393, %v395
    %v397 = vrot.slane %v390, %v396
    %v399 = vmul.f32 %v341, %v397
    %v401 = vlaneseq
    %v402 = vshrl.u32 %v401, 7
    %v403 = vsub.s32 0, %v402
    %v404 = vrot.slane %v399, %v403
    %v405 = vlaneseq
    %v406 = vshrl.u32 %v405, 7
    %v407 = vsub.s32 1, %v406
    %v408 = vrot.slane %v399, %v407
    %v411 = vmul.f32 %v359, %v404
    %v412 = vmul.f32 %v360, %v408
    %v414 = vlaneseq
    %v415 = vshrl.u32 %v414, 7
    %v416 = vsub.s32 0, %v415
    %v417 = vrot.slane %v343, %v416
    %v418 = vlaneseq
    %v419 = vshrl.u32 %v418, 7
    %v420 = vsub.s32 1, %v419
    %v421 = vrot.slane %v343, %v420
    %v424 = vadd.f32 %v411, %v417
    %v425 = vadd.f32 %v412, %v421
    %v426 = vmax.f32 %v424, 0.0
    %v427 = vmax.f32 %v425, 0.0
    %v428 = vpack.c.bf16 %v426, %v426
    %v429 = vpack.c.bf16 %v427, %v427
    %v430 = vld [vmem:[#allocation2] sm:$0xff]
    %v431 = vld [vmem:[#allocation2 + $0x8] sm:$0xff]
    %v432 = vld [vmem:[#allocation2 + $0x10] sm:$0xff]
    %v433 = vld [vmem:[#allocation2 + $0x18] sm:$0xff]
    %v434 = vld [vmem:[#allocation2 + $0x20] sm:$0xff]
    %v435 = vld [vmem:[#allocation2 + $0x28] sm:$0xff]
    %v436 = vld [vmem:[#allocation2 + $0x30] sm:$0xff]
    %v437 = vld [vmem:[#allocation2 + $0x38] sm:$0xff]
    %v438 = vld [vmem:[#allocation2 + $0x40] sm:$0xff]
    %v439 = vld [vmem:[#allocation2 + $0x48] sm:$0xff]
    %v440 = vld [vmem:[#allocation2 + $0x50] sm:$0xff]
    %v441 = vld [vmem:[#allocation2 + $0x58] sm:$0xff]
    %v442 = vld [vmem:[#allocation2 + $0x60] sm:$0xff]
    %v443 = vld [vmem:[#allocation2 + $0x68] sm:$0xff]
    %v444 = vld [vmem:[#allocation2 + $0x70] sm:$0xff]
    %v445 = vld [vmem:[#allocation2 + $0x78] sm:$0xff]
    %v446 = vld [vmem:[#allocation2 + $0x80] sm:$0xff]
    %v447 = vld [vmem:[#allocation2 + $0x88] sm:$0xff]
    %v448 = vld [vmem:[#allocation2 + $0x90] sm:$0xff]
    %v449 = vld [vmem:[#allocation2 + $0x98] sm:$0xff]
    %v450 = vld [vmem:[#allocation2 + $0xa0] sm:$0xff]
    %v451 = vld [vmem:[#allocation2 + $0xa8] sm:$0xff]
    %v452 = vld [vmem:[#allocation2 + $0xb0] sm:$0xff]
    %v453 = vld [vmem:[#allocation2 + $0xb8] sm:$0xff]
    %v454 = vld [vmem:[#allocation2 + $0xc0] sm:$0xff]
    %v455 = vld [vmem:[#allocation2 + $0xc8] sm:$0xff]
    %v456 = vld [vmem:[#allocation2 + $0xd0] sm:$0xff]
    %v457 = vld [vmem:[#allocation2 + $0xd8] sm:$0xff]
    %v458 = vld [vmem:[#allocation2 + $0xe0] sm:$0xff]
    %v459 = vld [vmem:[#allocation2 + $0xe8] sm:$0xff]
    %v460 = vld [vmem:[#allocation2 + $0xf0] sm:$0xff]
    %v461 = vld [vmem:[#allocation2 + $0xf8] sm:$0xff]
    %v494 = vunpack.c.l.b16 %v430
    %v495 = vunpack.c.h.b16 %v430
    %v496 = vunpack.c.l.b16 %v431
    %v497 = vunpack.c.h.b16 %v431
    %v498 = vunpack.c.l.b16 %v432
    %v499 = vunpack.c.h.b16 %v432
    %v500 = vunpack.c.l.b16 %v433
    %v501 = vunpack.c.h.b16 %v433
    %v502 = vunpack.c.l.b16 %v434
    %v503 = vunpack.c.h.b16 %v434
    %v504 = vunpack.c.l.b16 %v435
    %v505 = vunpack.c.h.b16 %v435
    %v506 = vunpack.c.l.b16 %v436
    %v507 = vunpack.c.h.b16 %v436
    %v508 = vunpack.c.l.b16 %v437
    %v509 = vunpack.c.h.b16 %v437
    %v510 = vunpack.c.l.b16 %v438
    %v511 = vunpack.c.h.b16 %v438
    %v512 = vunpack.c.l.b16 %v439
    %v513 = vunpack.c.h.b16 %v439
    %v514 = vunpack.c.l.b16 %v440
    %v515 = vunpack.c.h.b16 %v440
    %v516 = vunpack.c.l.b16 %v441
    %v517 = vunpack.c.h.b16 %v441
    %v518 = vunpack.c.l.b16 %v442
    %v519 = vunpack.c.h.b16 %v442
    %v520 = vunpack.c.l.b16 %v443
    %v521 = vunpack.c.h.b16 %v443
    %v522 = vunpack.c.l.b16 %v444
    %v523 = vunpack.c.h.b16 %v444
    %v524 = vunpack.c.l.b16 %v445
    %v525 = vunpack.c.h.b16 %v445
    %v526 = vunpack.c.l.b16 %v446
    %v527 = vunpack.c.h.b16 %v446
    %v528 = vunpack.c.l.b16 %v447
    %v529 = vunpack.c.h.b16 %v447
    %v530 = vunpack.c.l.b16 %v448
    %v531 = vunpack.c.h.b16 %v448
    %v532 = vunpack.c.l.b16 %v449
    %v533 = vunpack.c.h.b16 %v449
    %v534 = vunpack.c.l.b16 %v450
    %v535 = vunpack.c.h.b16 %v450
    %v536 = vunpack.c.l.b16 %v451
    %v537 = vunpack.c.h.b16 %v451
    %v538 = vunpack.c.l.b16 %v452
    %v539 = vunpack.c.h.b16 %v452
    %v540 = vunpack.c.l.b16 %v453
    %v541 = vunpack.c.h.b16 %v453
    %v542 = vunpack.c.l.b16 %v454
    %v543 = vunpack.c.h.b16 %v454
    %v544 = vunpack.c.l.b16 %v455
    %v545 = vunpack.c.h.b16 %v455
    %v546 = vunpack.c.l.b16 %v456
    %v547 = vunpack.c.h.b16 %v456
    %v548 = vunpack.c.l.b16 %v457
    %v549 = vunpack.c.h.b16 %v457
    %v550 = vunpack.c.l.b16 %v458
    %v551 = vunpack.c.h.b16 %v458
    %v552 = vunpack.c.l.b16 %v459
    %v553 = vunpack.c.h.b16 %v459
    %v554 = vunpack.c.l.b16 %v460
    %v555 = vunpack.c.h.b16 %v460
    %v556 = vunpack.c.l.b16 %v461
    %v557 = vunpack.c.h.b16 %v461
    %v558 = vpack.c.b16 %v496, %v494
    %v559 = vpack.c.b16 %v497, %v495
    %v560 = vpack.c.b16 %v500, %v498
    %v561 = vpack.c.b16 %v501, %v499
    %v562 = vpack.c.b16 %v504, %v502
    %v563 = vpack.c.b16 %v505, %v503
    %v564 = vpack.c.b16 %v508, %v506
    %v565 = vpack.c.b16 %v509, %v507
    %v566 = vpack.c.b16 %v512, %v510
    %v567 = vpack.c.b16 %v513, %v511
    %v568 = vpack.c.b16 %v516, %v514
    %v569 = vpack.c.b16 %v517, %v515
    %v570 = vpack.c.b16 %v520, %v518
    %v571 = vpack.c.b16 %v521, %v519
    %v572 = vpack.c.b16 %v524, %v522
    %v573 = vpack.c.b16 %v525, %v523
    %v574 = vpack.c.b16 %v528, %v526
    %v575 = vpack.c.b16 %v529, %v527
    %v576 = vpack.c.b16 %v532, %v530
    %v577 = vpack.c.b16 %v533, %v531
    %v578 = vpack.c.b16 %v536, %v534
    %v579 = vpack.c.b16 %v537, %v535
    %v580 = vpack.c.b16 %v540, %v538
    %v581 = vpack.c.b16 %v541, %v539
    %v582 = vpack.c.b16 %v544, %v542
    %v583 = vpack.c.b16 %v545, %v543
    %v584 = vpack.c.b16 %v548, %v546
    %v585 = vpack.c.b16 %v549, %v547
    %v586 = vpack.c.b16 %v552, %v550
    %v587 = vpack.c.b16 %v553, %v551
    %v588 = vpack.c.b16 %v556, %v554
    %v589 = vpack.c.b16 %v557, %v555
    %622 = vmatprep.subr.bf16.mxu0 %v559
    %623 = vmatpush1.bf16.msra.mxu0 %v558
    %624 = vmatprep.subr.bf16.mxu0 %v561
    %625 = vmatpush1.bf16.msra.mxu0 %v560
    %626 = vmatprep.subr.bf16.mxu0 %v563
    %627 = vmatpush1.bf16.msra.mxu0 %v562
    %628 = vmatprep.subr.bf16.mxu0 %v565
    %629 = vmatpush1.bf16.msra.mxu0 %v564
    %630 = vmatprep.subr.bf16.mxu0 %v567
    %631 = vmatpush1.bf16.msra.mxu0 %v566
    %632 = vmatprep.subr.bf16.mxu0 %v569
    %633 = vmatpush1.bf16.msra.mxu0 %v568
    %634 = vmatprep.subr.bf16.mxu0 %v571
    %635 = vmatpush1.bf16.msra.mxu0 %v570
    %636 = vmatprep.subr.bf16.mxu0 %v573
    %637 = vmatpush1.bf16.msra.mxu0 %v572
    %638 = vmatprep.subr.bf16.mxu0 %v575
    %639 = vmatpush1.bf16.msra.mxu0 %v574
    %640 = vmatprep.subr.bf16.mxu0 %v577
    %641 = vmatpush1.bf16.msra.mxu0 %v576
    %642 = vmatprep.subr.bf16.mxu0 %v579
    %643 = vmatpush1.bf16.msra.mxu0 %v578
    %644 = vmatprep.subr.bf16.mxu0 %v581
    %645 = vmatpush1.bf16.msra.mxu0 %v580
    %646 = vmatprep.subr.bf16.mxu0 %v583
    %647 = vmatpush1.bf16.msra.mxu0 %v582
    %648 = vmatprep.subr.bf16.mxu0 %v585
    %649 = vmatpush1.bf16.msra.mxu0 %v584
    %650 = vmatprep.subr.bf16.mxu0 %v587
    %651 = vmatpush1.bf16.msra.mxu0 %v586
    %652 = vmatprep.subr.bf16.mxu0 %v589
    %653 = vmatpush1.bf16.msra.mxu0 %v588
    %654 = vmatprep.mubr.bf16.mxu0 %v429
    %655 = vmatmul.mubr.bf16.gmra.mrb[0].mxu0 %v428
    %v656 = vpop.f32.mrb[0].mxu0
    %v657 = vadd.f32 0.0, %v656
    %v658 = vpop.f32.mrb[0].mxu0
    %v659 = vadd.f32 0.0, %v658
    %v660 = vpop.f32.mrb[0].mxu0
    %v661 = vpop.f32.mrb[0].mxu0
    %662 = vdwg.mxu0
    %s663 = scalar_lea.vmem %s6, 2
    %v664 = vld [vmem:[%s663] ss:$8 sm:$0x3]
    %s665 = scalar_lea.vmem %s6, 3
    %v666 = vld [vmem:[%s665] ss:$8 sm:$0x3]
    %v667 = vrot.slane %v657, 4
    %v668 = vadd.f32 %v657, %v667
    %v669 = vrot.slane %v668, 2
    %v670 = vadd.f32 %v668, %v669
    %v671 = vrot.slane %v670, 1
    %v672 = vadd.f32 %v670, %v671
    %v673 = vrot.slane %v659, 4
    %v674 = vadd.f32 %v659, %v673
    %v675 = vrot.slane %v674, 2
    %v676 = vadd.f32 %v674, %v675
    %v677 = vrot.slane %v676, 1
    %v678 = vadd.f32 %v676, %v677
    %v679 = vmul.f32 %v672, %v356
    %v680 = vmul.f32 %v678, %v356
    %v681 = vsub.f32 %v657, %v679
    %v682 = vsub.f32 %v659, %v680
    %v683 = vmul.f32 %v681, %v681
    %v684 = vmul.f32 %v682, %v682
    %v685 = vrot.slane %v683, 4
    %v686 = vadd.f32 %v683, %v685
    %v687 = vrot.slane %v686, 2
    %v688 = vadd.f32 %v686, %v687
    %v689 = vrot.slane %v688, 1
    %v690 = vadd.f32 %v688, %v689
    %v691 = vrot.slane %v684, 4
    %v692 = vadd.f32 %v684, %v691
    %v693 = vrot.slane %v692, 2
    %v694 = vadd.f32 %v692, %v693
    %v695 = vrot.slane %v694, 1
    %v696 = vadd.f32 %v694, %v695
    %v697 = vmul.f32 %v690, %v356
    %v698 = vmul.f32 %v696, %v356
    %v699 = vadd.f32 %v697, 1e-05
    %v700 = vadd.f32 %v698, 1e-05
    %v701 = vrsqrt.pop %v699
    %v702 = vrsqrt.pop %v700
    %v705 = vcombine.low %v701, %v702
    %v707 = vunpack.c.l.s4 1966171168
    %v708 = vunpack.c.0.s8 %v707
    %v709 = vlaneseq
    %v710 = vshrl.u32 %v709, 7
    %v711 = vsub.s32 %v708, %v710
    %v712 = vrot.slane %v705, %v711
    %v714 = vunpack.c.l.s4 1966171168
    %v715 = vunpack.c.0.s8 %v714
    %v716 = vlaneseq
    %v717 = vshrl.u32 %v716, 7
    %v718 = vsub.s32 %v715, %v717
    %v719 = vrot.slane %v712, %v718
    %v721 = vmul.f32 %v664, %v719
    %v723 = vlaneseq
    %v724 = vshrl.u32 %v723, 7
    %v725 = vsub.s32 0, %v724
    %v726 = vrot.slane %v721, %v725
    %v727 = vlaneseq
    %v728 = vshrl.u32 %v727, 7
    %v729 = vsub.s32 1, %v728
    %v730 = vrot.slane %v721, %v729
    %v733 = vmul.f32 %v681, %v726
    %v734 = vmul.f32 %v682, %v730
    %v736 = vlaneseq
    %v737 = vshrl.u32 %v736, 7
    %v738 = vsub.s32 0, %v737
    %v739 = vrot.slane %v666, %v738
    %v740 = vlaneseq
    %v741 = vshrl.u32 %v740, 7
    %v742 = vsub.s32 1, %v741
    %v743 = vrot.slane %v666, %v742
    %v746 = vadd.f32 %v733, %v739
    %v747 = vadd.f32 %v734, %v743
    %v748 = vmax.f32 %v746, 0.0
    %v749 = vmax.f32 %v747, 0.0
    %v750 = vpack.c.bf16 %v748, %v748
    %v751 = vpack.c.bf16 %v749, %v749
    %v752 = vld [vmem:[#allocation5] sm:$0xf]
    %v753 = vld [vmem:[#allocation5 + $0x4] sm:$0xf]
    %v754 = vld [vmem:[#allocation5 + $0x8] sm:$0xf]
    %v755 = vld [vmem:[#allocation5 + $0xc] sm:$0xf]
    %v756 = vld [vmem:[#allocation5 + $0x10] sm:$0xf]
    %v757 = vld [vmem:[#allocation5 + $0x14] sm:$0xf]
    %v758 = vld [vmem:[#allocation5 + $0x18] sm:$0xf]
    %v759 = vld [vmem:[#allocation5 + $0x1c] sm:$0xf]
    %v760 = vld [vmem:[#allocation5 + $0x20] sm:$0xf]
    %v761 = vld [vmem:[#allocation5 + $0x24] sm:$0xf]
    %v762 = vld [vmem:[#allocation5 + $0x28] sm:$0xf]
    %v763 = vld [vmem:[#allocation5 + $0x2c] sm:$0xf]
    %v764 = vld [vmem:[#allocation5 + $0x30] sm:$0xf]
    %v765 = vld [vmem:[#allocation5 + $0x34] sm:$0xf]
    %v766 = vld [vmem:[#allocation5 + $0x38] sm:$0xf]
    %v767 = vld [vmem:[#allocation5 + $0x3c] sm:$0xf]
    %v768 = vld [vmem:[#allocation5 + $0x40] sm:$0xf]
    %v769 = vld [vmem:[#allocation5 + $0x44] sm:$0xf]
    %v770 = vld [vmem:[#allocation5 + $0x48] sm:$0xf]
    %v771 = vld [vmem:[#allocation5 + $0x4c] sm:$0xf]
    %v772 = vld [vmem:[#allocation5 + $0x50] sm:$0xf]
    %v773 = vld [vmem:[#allocation5 + $0x54] sm:$0xf]
    %v774 = vld [vmem:[#allocation5 + $0x58] sm:$0xf]
    %v775 = vld [vmem:[#allocation5 + $0x5c] sm:$0xf]
    %v776 = vld [vmem:[#allocation5 + $0x60] sm:$0xf]
    %v777 = vld [vmem:[#allocation5 + $0x64] sm:$0xf]
    %v778 = vld [vmem:[#allocation5 + $0x68] sm:$0xf]
    %v779 = vld [vmem:[#allocation5 + $0x6c] sm:$0xf]
    %v780 = vld [vmem:[#allocation5 + $0x70] sm:$0xf]
    %v781 = vld [vmem:[#allocation5 + $0x74] sm:$0xf]
    %v782 = vld [vmem:[#allocation5 + $0x78] sm:$0xf]
    %v783 = vld [vmem:[#allocation5 + $0x7c] sm:$0xf]
    %v816 = vunpack.c.l.b16 %v752
    %v817 = vunpack.c.l.b16 %v753
    %v818 = vunpack.c.l.b16 %v754
    %v819 = vunpack.c.l.b16 %v755
    %v820 = vunpack.c.l.b16 %v756
    %v821 = vunpack.c.l.b16 %v757
    %v822 = vunpack.c.l.b16 %v758
    %v823 = vunpack.c.l.b16 %v759
    %v824 = vunpack.c.l.b16 %v760
    %v825 = vunpack.c.l.b16 %v761
    %v826 = vunpack.c.l.b16 %v762
    %v827 = vunpack.c.l.b16 %v763
    %v828 = vunpack.c.l.b16 %v764
    %v829 = vunpack.c.l.b16 %v765
    %v830 = vunpack.c.l.b16 %v766
    %v831 = vunpack.c.l.b16 %v767
    %v832 = vunpack.c.l.b16 %v768
    %v833 = vunpack.c.l.b16 %v769
    %v834 = vunpack.c.l.b16 %v770
    %v835 = vunpack.c.l.b16 %v771
    %v836 = vunpack.c.l.b16 %v772
    %v837 = vunpack.c.l.b16 %v773
    %v838 = vunpack.c.l.b16 %v774
    %v839 = vunpack.c.l.b16 %v775
    %v840 = vunpack.c.l.b16 %v776
    %v841 = vunpack.c.l.b16 %v777
    %v842 = vunpack.c.l.b16 %v778
    %v843 = vunpack.c.l.b16 %v779
    %v844 = vunpack.c.l.b16 %v780
    %v845 = vunpack.c.l.b16 %v781
    %v846 = vunpack.c.l.b16 %v782
    %v847 = vunpack.c.l.b16 %v783
    %v848 = vpack.c.b16 %v817, %v816
    %v849 = vpack.c.b16 %v819, %v818
    %v850 = vpack.c.b16 %v821, %v820
    %v851 = vpack.c.b16 %v823, %v822
    %v852 = vpack.c.b16 %v825, %v824
    %v853 = vpack.c.b16 %v827, %v826
    %v854 = vpack.c.b16 %v829, %v828
    %v855 = vpack.c.b16 %v831, %v830
    %v856 = vpack.c.b16 %v833, %v832
    %v857 = vpack.c.b16 %v835, %v834
    %v858 = vpack.c.b16 %v837, %v836
    %v859 = vpack.c.b16 %v839, %v838
    %v860 = vpack.c.b16 %v841, %v840
    %v861 = vpack.c.b16 %v843, %v842
    %v862 = vpack.c.b16 %v845, %v844
    %v863 = vpack.c.b16 %v847, %v846
    %880 = vmatprep.subr.bf16.mxu0 0
    %881 = vmatpush1.bf16.msra.mxu0 %v848
    %882 = vmatprep.subr.bf16.mxu0 0
    %883 = vmatpush1.bf16.msra.mxu0 %v849
    %884 = vmatprep.subr.bf16.mxu0 0
    %885 = vmatpush1.bf16.msra.mxu0 %v850
    %886 = vmatprep.subr.bf16.mxu0 0
    %887 = vmatpush1.bf16.msra.mxu0 %v851
    %888 = vmatprep.subr.bf16.mxu0 0
    %889 = vmatpush1.bf16.msra.mxu0 %v852
    %890 = vmatprep.subr.bf16.mxu0 0
    %891 = vmatpush1.bf16.msra.mxu0 %v853
    %892 = vmatprep.subr.bf16.mxu0 0
    %893 = vmatpush1.bf16.msra.mxu0 %v854
    %894 = vmatprep.subr.bf16.mxu0 0
    %895 = vmatpush1.bf16.msra.mxu0 %v855
    %896 = vmatprep.subr.bf16.mxu0 0
    %897 = vmatpush1.bf16.msra.mxu0 %v856
    %898 = vmatprep.subr.bf16.mxu0 0
    %899 = vmatpush1.bf16.msra.mxu0 %v857
    %900 = vmatprep.subr.bf16.mxu0 0
    %901 = vmatpush1.bf16.msra.mxu0 %v858
    %902 = vmatprep.subr.bf16.mxu0 0
    %903 = vmatpush1.bf16.msra.mxu0 %v859
    %904 = vmatprep.subr.bf16.mxu0 0
    %905 = vmatpush1.bf16.msra.mxu0 %v860
    %906 = vmatprep.subr.bf16.mxu0 0
    %907 = vmatpush1.bf16.msra.mxu0 %v861
    %908 = vmatprep.subr.bf16.mxu0 0
    %909 = vmatpush1.bf16.msra.mxu0 %v862
    %910 = vmatprep.subr.bf16.mxu0 0
    %911 = vmatpush1.bf16.msra.mxu0 %v863
    %912 = vmatprep.mubr.bf16.mxu0 %v751
    %913 = vmatmul.mubr.bf16.gmra.mrb[0].mxu0 %v750
    %v914 = vpop.f32.mrb[0].mxu0
    %v915 = vadd.f32 0.0, %v914
    %v916 = vpop.f32.mrb[0].mxu0
    %v917 = vpop.f32.mrb[0].mxu0
    %v918 = vpop.f32.mrb[0].mxu0
    %919 = vdwg.mxu0
    %v920 = vld [vmem:[%s6 + $0x4] ss:$0 sm:$0xff]
    %v921 = vld [vmem:[%s6 + $0x5] ss:$0 sm:$0xff]
    %v922 = vrot.slane %v915, 4
    %v923 = vadd.f32 %v915, %v922
    %v924 = vrot.slane %v923, 2
    %v925 = vadd.f32 %v923, %v924
    %v926 = vrot.slane %v925, 1
    %v927 = vadd.f32 %v925, %v926
    %v928 = vmul.f32 %v927, %v356
    %v929 = vsub.f32 %v915, %v928
    %v930 = vmul.f32 %v929, %v929
    %v931 = vrot.slane %v930, 4
    %v932 = vadd.f32 %v930, %v931
    %v933 = vrot.slane %v932, 2
    %v934 = vadd.f32 %v932, %v933
    %v935 = vrot.slane %v934, 1
    %v936 = vadd.f32 %v934, %v935
    %v937 = vmul.f32 %v936, %v356
    %v938 = vadd.f32 %v937, 1e-05
    %v939 = vrsqrt.pop %v938
    %v940 = vmul.f32 %v920, %v939
    %v941 = vmul.f32 %v929, %v940
    %v942 = vadd.f32 %v941, %v921
    %v943 = vmax.f32 %v942, 0.0
    %v944 = vpack.c.bf16 %v943, %v943
    %v945 = vld [vmem:[%s4] sm:$0xf]
    %v946 = vld [vmem:[%s4 + $0x4] sm:$0xf]
    %v947 = vld [vmem:[%s4 + $0x8] sm:$0xf]
    %v948 = vld [vmem:[%s4 + $0xc] sm:$0xf]
    %v949 = vld [vmem:[%s4 + $0x10] sm:$0xf]
    %v950 = vld [vmem:[%s4 + $0x14] sm:$0xf]
    %v951 = vld [vmem:[%s4 + $0x18] sm:$0xf]
    %v952 = vld [vmem:[%s4 + $0x1c] sm:$0xf]
    %v953 = vld [vmem:[%s4 + $0x20] sm:$0xf]
    %v954 = vld [vmem:[%s4 + $0x24] sm:$0xf]
    %v955 = vld [vmem:[%s4 + $0x28] sm:$0xf]
    %v956 = vld [vmem:[%s4 + $0x2c] sm:$0xf]
    %v957 = vld [vmem:[%s4 + $0x30] sm:$0xf]
    %v958 = vld [vmem:[%s4 + $0x34] sm:$0xf]
    %v959 = vld [vmem:[%s4 + $0x38] sm:$0xf]
    %v960 = vld [vmem:[%s4 + $0x3c] sm:$0xf]
    %v977 = vunpack.c.l.b16 %v945
    %v978 = vunpack.c.l.b16 %v946
    %v979 = vunpack.c.l.b16 %v947
    %v980 = vunpack.c.l.b16 %v948
    %v981 = vunpack.c.l.b16 %v949
    %v982 = vunpack.c.l.b16 %v950
    %v983 = vunpack.c.l.b16 %v951
    %v984 = vunpack.c.l.b16 %v952
    %v985 = vunpack.c.l.b16 %v953
    %v986 = vunpack.c.l.b16 %v954
    %v987 = vunpack.c.l.b16 %v955
    %v988 = vunpack.c.l.b16 %v956
    %v989 = vunpack.c.l.b16 %v957
    %v990 = vunpack.c.l.b16 %v958
    %v991 = vunpack.c.l.b16 %v959
    %v992 = vunpack.c.l.b16 %v960
    %v993 = vpack.c.b16 %v978, %v977
    %v994 = vpack.c.b16 %v980, %v979
    %v995 = vpack.c.b16 %v982, %v981
    %v996 = vpack.c.b16 %v984, %v983
    %v997 = vpack.c.b16 %v986, %v985
    %v998 = vpack.c.b16 %v988, %v987
    %v999 = vpack.c.b16 %v990, %v989
    %v1000 = vpack.c.b16 %v992, %v991
    %1009 = vmatprep.subr.bf16.mxu0 0
    %1010 = vmatpush1.bf16.msra.mxu0 %v993
    %1011 = vmatprep.subr.bf16.mxu0 0
    %1012 = vmatpush1.bf16.msra.mxu0 %v994
    %1013 = vmatprep.subr.bf16.mxu0 0
    %1014 = vmatpush1.bf16.msra.mxu0 %v995
    %1015 = vmatprep.subr.bf16.mxu0 0
    %1016 = vmatpush1.bf16.msra.mxu0 %v996
    %1017 = vmatprep.subr.bf16.mxu0 0
    %1018 = vmatpush1.bf16.msra.mxu0 %v997
    %1019 = vmatprep.subr.bf16.mxu0 0
    %1020 = vmatpush1.bf16.msra.mxu0 %v998
    %1021 = vmatprep.subr.bf16.mxu0 0
    %1022 = vmatpush1.bf16.msra.mxu0 %v999
    %1023 = vmatprep.subr.bf16.mxu0 0
    %1024 = vmatpush1.bf16.msra.mxu0 %v1000
    %1025 = vmatprep.subr.bf16.mxu0 0
    %1026 = vmatpush1.bf16.msra.mxu0 0
    %1027 = vmatprep.subr.bf16.mxu0 0
    %1028 = vmatpush1.bf16.msra.mxu0 0
    %1029 = vmatprep.subr.bf16.mxu0 0
    %1030 = vmatpush1.bf16.msra.mxu0 0
    %1031 = vmatprep.subr.bf16.mxu0 0
    %1032 = vmatpush1.bf16.msra.mxu0 0
    %1033 = vmatprep.subr.bf16.mxu0 0
    %1034 = vmatpush1.bf16.msra.mxu0 0
    %1035 = vmatprep.subr.bf16.mxu0 0
    %1036 = vmatpush1.bf16.msra.mxu0 0
    %1037 = vmatprep.subr.bf16.mxu0 0
    %1038 = vmatpush1.bf16.msra.mxu0 0
    %1039 = vmatprep.subr.bf16.mxu0 0
    %1040 = vmatpush1.bf16.msra.mxu0 0
    %1041 = vmatprep.mubr.bf16.mxu0 0
    %1042 = vmatmul.mubr.bf16.gmra.mrb[0].mxu0 %v944
    %v1043 = vpop.f32.mrb[0].mxu0
    %v1044 = vadd.f32 0.0, %v1043
    %v1045 = vpop.f32.mrb[0].mxu0
    %v1046 = vpop.f32.mrb[0].mxu0
    %v1047 = vpop.f32.mrb[0].mxu0
    %1048 = vdwg.mxu0
    %v1049 = vld [vmem:[%s6 + $0x6] ss:$0 sm:$0xff]
    %v1050 = vld [vmem:[%s6 + $0x7] ss:$0 sm:$0xff]
    %vm1051 = vcmask 523264
    %v1052 = vsel %vm1051, %v1044, 0.0
    %v1053 = vrot.slane %v1052, 4
    %v1054 = vadd.f32 %v1052, %v1053
    %v1055 = vrot.slane %v1054, 2
    %v1056 = vadd.f32 %v1054, %v1055
    %v1057 = vrot.slane %v1056, 1
    %v1058 = vadd.f32 %v1056, %v1057
    %v1059 = vmul.f32 %v1058, %v356
    %v1060 = vsub.f32 %v1044, %v1059
    %v1061 = vmul.f32 %v1060, %v1060
    %v1062 = vsel %vm1051, %v1061, 0.0
    %v1063 = vrot.slane %v1062, 4
    %v1064 = vadd.f32 %v1062, %v1063
    %v1065 = vrot.slane %v1064, 2
    %v1066 = vadd.f32 %v1064, %v1065
    %v1067 = vrot.slane %v1066, 1
    %v1068 = vadd.f32 %v1066, %v1067
    %v1069 = vmul.f32 %v1068, %v356
    %v1070 = vadd.f32 %v1069, 1e-05
    %v1071 = vrsqrt.pop %v1070
    %v1072 = vmul.f32 %v1049, %v1071
    %v1073 = vmul.f32 %v1060, %v1072
    %v1074 = vadd.f32 %v1073, %v1050
    %v1075 = vmax.f32 %v1074, 0.0
    %v1076 = vpack.c.bf16 %v1075, %v1075
    %v1077 = vld [vmem:[%s5] sm:$0xf]
    %v1078 = vld [vmem:[%s5 + $0x4] sm:$0xf]
    %v1079 = vld [vmem:[%s5 + $0x8] sm:$0xf]
    %v1080 = vld [vmem:[%s5 + $0xc] sm:$0xf]
    %v1081 = vld [vmem:[%s5 + $0x10] sm:$0xf]
    %v1082 = vld [vmem:[%s5 + $0x14] sm:$0xf]
    %v1083 = vld [vmem:[%s5 + $0x18] sm:$0xf]
    %v1084 = vld [vmem:[%s5 + $0x1c] sm:$0xf]
    %v1085 = vld [vmem:[%s6 + $0x10] ss:$0 sm:$0xff]
    %v1094 = vunpack.c.l.b16 %v1077
    %v1095 = vunpack.c.l.b16 %v1078
    %v1096 = vunpack.c.l.b16 %v1079
    %v1097 = vunpack.c.l.b16 %v1080
    %v1098 = vunpack.c.l.b16 %v1081
    %v1099 = vunpack.c.l.b16 %v1082
    %v1100 = vunpack.c.l.b16 %v1083
    %v1101 = vunpack.c.l.b16 %v1084
    %v1102 = vpack.c.b16 %v1095, %v1094
    %v1103 = vpack.c.b16 %v1097, %v1096
    %v1104 = vpack.c.b16 %v1099, %v1098
    %v1105 = vpack.c.b16 %v1101, %v1100
    %v1111 = vsel %vm1051, %v1076, 0
    %1113 = vmatprep.subr.bf16.mxu0 0
    %1114 = vmatpush1.bf16.msra.mxu0 %v1102
    %1115 = vmatprep.subr.bf16.mxu0 0
    %1116 = vmatpush1.bf16.msra.mxu0 %v1103
    %1117 = vmatprep.subr.bf16.mxu0 0
    %1118 = vmatpush1.bf16.msra.mxu0 %v1104
    %1119 = vmatprep.subr.bf16.mxu0 0
    %1120 = vmatpush1.bf16.msra.mxu0 %v1105
    %1121 = vmatprep.subr.bf16.mxu0 0
    %1122 = vmatpush1.bf16.msra.mxu0 0
    %1123 = vmatprep.subr.bf16.mxu0 0
    %1124 = vmatpush1.bf16.msra.mxu0 0
    %1125 = vmatprep.subr.bf16.mxu0 0
    %1126 = vmatpush1.bf16.msra.mxu0 0
    %1127 = vmatprep.subr.bf16.mxu0 0
    %1128 = vmatpush1.bf16.msra.mxu0 0
    %1129 = vmatprep.subr.bf16.mxu0 0
    %1130 = vmatpush1.bf16.msra.mxu0 0
    %1131 = vmatprep.subr.bf16.mxu0 0
    %1132 = vmatpush1.bf16.msra.mxu0 0
    %1133 = vmatprep.subr.bf16.mxu0 0
    %1134 = vmatpush1.bf16.msra.mxu0 0
    %1135 = vmatprep.subr.bf16.mxu0 0
    %1136 = vmatpush1.bf16.msra.mxu0 0
    %1137 = vmatprep.subr.bf16.mxu0 0
    %1138 = vmatpush1.bf16.msra.mxu0 0
    %1139 = vmatprep.subr.bf16.mxu0 0
    %1140 = vmatpush1.bf16.msra.mxu0 0
    %1141 = vmatprep.subr.bf16.mxu0 0
    %1142 = vmatpush1.bf16.msra.mxu0 0
    %1143 = vmatprep.subr.bf16.mxu0 0
    %1144 = vmatpush1.bf16.msra.mxu0 0
    %1145 = vmatprep.mubr.bf16.mxu0 0
    %1146 = vmatmul.mubr.bf16.gmra.mrb[0].mxu0 %v1111
    %v1147 = vpop.f32.mrb[0].mxu0
    %v1148 = vadd.f32 %v1085, %v1147
    %v1149 = vpop.f32.mrb[0].mxu0
    %v1150 = vpop.f32.mrb[0].mxu0
    %v1151 = vpop.f32.mrb[0].mxu0
    %1152 = vdwg.mxu0
    %v1153 = vxor.u32 %v1148, 2147483648
    %v1154 = vmul.f32 %v1153, 1.442695
    %v1155 = vpow.pop %v1154
    %v1156 = vadd.f32 %v1155, 1.0
    %v1157 = vrcp.pop %v1156
    %v1158 = vmul.f32 1.0, %v1157
    %1159 = vst [vmem:[#allocation7] sm:$0xff] %v1158
    // Predicated region
    $region38: #{bnmlp_forward_batched.1} parent=1 // pred_check
      _
    $region39: #{bnmlp_forward_batched.1} parent=1 // pred_check_branch
      %1161 = sbr.rel (0) target = $region41
    $region40: #{bnmlp_forward_batched.1} parent=1 // pred_region
      %s1163 = ssub.s32 128, 128
      %1164 = vsyncadd [#allocation4], %s1163
      %s1166 = sshll.u32 [#allocation7], 4
      %s1167 = int_to_ptr.vmem [resolvable:$true] %s1166
      %1169 = dma.vmem_to_hbm [thread:$0]  %s1167, 128, %s7, [#allocation4]
    $region41: #{bnmlp_forward_batched.1} parent=1 // pred_fallthru
      _
    // Predicated region
    $region42: #{bnmlp_forward_batched.1} parent=1 // pred_check
      _
    $region43: #{bnmlp_forward_batched.1} parent=1 // pred_check_branch
      %1171 = sbr.rel (0) target = $region45
    $region44: #{bnmlp_forward_batched.1} parent=1 // pred_region
      %1172 = dma.done [#allocation4], 128
    $region45: #{bnmlp_forward_batched.1} parent=1 // pred_fallthru
      _
    %1173 = vsyncpa [#allocation3], 1
    %1174 = vsyncpa [#allocation6], 1
    %1175 = vsyncpa [#allocation4], 1

</llo_original>
